<compile_context>
chip_gen: v7x
topology: tpu7x:2x2x1
jax: 0.10.0
libtpu: 0.0.40
codegen_flags: <defaults>
</compile_context>

<pallas_src>
import functools

import jax
import jax.numpy as jnp
from jax.experimental import pallas as pl
from jax.experimental.pallas import tpu as pltpu


# -----------------------------------------------------------------------------
# Kernel
# -----------------------------------------------------------------------------
def _multi_gru_kernel(h_ref, x_ref, w_ref, wqh_ref, b_ref, out_ref, *,
                      n_head, hidden_dim, input_dim):
    """One batch tile, all heads.

    h_ref:   (Bt, n_head*H)       f32   hidden state, heads packed along lanes
    x_ref:   (Bt, n_head*I)       f32   input, heads packed along lanes
    w_ref:   (n_head, H+I, 3H)    bf16/f32   fused [Wz | Wr | Wq_x] per head
    wqh_ref: (n_head, H, H)       bf16/f32   Wq rows that multiply (r*h)
    b_ref:   (n_head, 1, 3H)      f32   fused [bz | br | bq]
    out_ref: (Bt, n_head*H)       f32
    """
    H, I = hidden_dim, input_dim

    outs = []
    # Static (fully unrolled) loop over heads: each head is one wide MXU
    # matmul (K = H+I, N = 3H) plus one tiny (H, H) matmul.
    for g in range(n_head):
        h_g = h_ref[:, g * H:(g + 1) * H]            # (Bt, H)  f32
        x_g = x_ref[:, g * I:(g + 1) * I]            # (Bt, I)  f32

        # Single full-K contraction over the fused gate weight.
        hx = jnp.concatenate([h_g, x_g], axis=-1)    # (Bt, H+I)
        w_big = w_ref[g].astype(jnp.float32)         # (H+I, 3H) upcast in VMEM
        pre = jnp.dot(hx, w_big, preferred_element_type=jnp.float32)
        pre = pre + b_ref[g]                         # (Bt, 3H) + (1, 3H)

        z = jax.nn.sigmoid(pre[:, 0 * H:1 * H])
        r = jax.nn.sigmoid(pre[:, 1 * H:2 * H])
        q_x = pre[:, 2 * H:3 * H]                    # x @ Wq_x + bq

        wq_h = wqh_ref[g].astype(jnp.float32)        # (H, H)
        q = jnp.tanh(
            jnp.dot(r * h_g, wq_h, preferred_element_type=jnp.float32) + q_x)

        outs.append((1.0 - z) * h_g + z * q)         # (Bt, H)

    # Lane-dense slab store: a single wide (Bt, n_head*H) write (no masked
    # per-head vst.msk stores).
    out_ref[...] = jnp.concatenate(outs, axis=-1)


# -----------------------------------------------------------------------------
# Parameter packing (do this ONCE per model, outside the hot path)
# -----------------------------------------------------------------------------
def pack_params(params, weight_dtype=jnp.bfloat16):
    """Pack PyTorch-style MultiGRU params into the fused kernel layout.

    params: (wz, bz, wr, br, wq, bq) with w*: (n_head, H+I, H), b*: (n_head, H)
    Returns (w_big, wq_h, b_big):
      w_big: (n_head, H+I, 3H)  columns [Wz | Wr | Wq_x-only]  (weight_dtype)
      wq_h : (n_head, H, H)     Wq rows multiplying (r*h)       (weight_dtype)
      b_big: (n_head, 1, 3H)    [bz | br | bq]                  (f32)
    """
    wz, bz, wr, br, wq, bq = params
    n_head, _, H = wz.shape

    # h-rows of the q column block are zero: q's h-contribution must go
    # through r*h, handled by the separate small (H, H) matmul.
    w_h_rows = jnp.concatenate(
        [wz[:, :H, :], wr[:, :H, :], jnp.zeros((n_head, H, H), wz.dtype)],
        axis=-1)                                             # (n_head, H, 3H)
    w_x_rows = jnp.concatenate(
        [wz[:, H:, :], wr[:, H:, :], wq[:, H:, :]], axis=-1)  # (n_head, I, 3H)
    w_big = jnp.concatenate([w_h_rows, w_x_rows], axis=1).astype(weight_dtype)

    wq_h = wq[:, :H, :].astype(weight_dtype)                  # (n_head, H, H)

    b_big = jnp.concatenate([bz, br, bq], axis=-1).astype(jnp.float32)
    b_big = b_big.reshape(n_head, 1, 3 * H)
    return w_big, wq_h, b_big


# -----------------------------------------------------------------------------
# Wrapper
# -----------------------------------------------------------------------------
def _pick_batch_tile(B, max_rows=128):
    """Batch-tile size: full B if small, else a multiple of 8 dividing B."""
    if B <= max_rows:
        return B
    for bt in range(max_rows, 0, -8):      # 128, 120, ..., 8
        if B % bt == 0:
            return bt
    return B


def multi_gru(h, x, packed, *, batch_tile=None):
    """h: (B, n_head, H) f32, x: (B, n_head, I) f32 -> (B, n_head, H) f32."""
    B, n_head, H = h.shape
    I = x.shape[-1]
    w_big, wq_h, b_big = packed
    assert w_big.shape == (n_head, H + I, 3 * H)
    assert wq_h.shape == (n_head, H, H)
    assert b_big.shape == (n_head, 1, 3 * H)

    Bt = batch_tile if batch_tile is not None else _pick_batch_tile(B)
    assert B % Bt == 0 and (Bt == B or Bt % 8 == 0), "bad batch tile"

    # FREE reshapes (no HBM relayout, unlike a transpose): heads packed along
    # the lane dimension -> lane-dense input DMAs and output stores.
    h2 = h.reshape(B, n_head * H).astype(jnp.float32)
    x2 = x.reshape(B, n_head * I).astype(jnp.float32)

    kernel = functools.partial(_multi_gru_kernel, n_head=n_head,
                               hidden_dim=H, input_dim=I)

    out2 = pl.pallas_call(
        kernel,
        out_shape=jax.ShapeDtypeStruct((B, n_head * H), jnp.float32),
        grid_spec=pltpu.PrefetchScalarGridSpec(
            num_scalar_prefetch=0,
            grid=(B // Bt,),
            in_specs=[
                pl.BlockSpec((Bt, n_head * H), lambda b: (b, 0)),
                pl.BlockSpec((Bt, n_head * I), lambda b: (b, 0)),
                # Weights / biases: constant index_map -> DMA'd once and kept
                # resident in VMEM across all batch tiles.
                pl.BlockSpec(w_big.shape, lambda b: (0, 0, 0)),
                pl.BlockSpec(wq_h.shape, lambda b: (0, 0, 0)),
                pl.BlockSpec(b_big.shape, lambda b: (0, 0, 0)),
            ],
            out_specs=pl.BlockSpec((Bt, n_head * H), lambda b: (b, 0)),
        ),
        compiler_params=pltpu.CompilerParams(
            # Batch tiles are independent -> on v7x the two TensorCores split
            # them (needs B > batch_tile for >=2 grid steps); v5e/v6e run a
            # pipelined loop.  Explicit VMEM limit is safe on all generations
            # and leaves headroom on v7x's 64 MiB VMEM.
            dimension_semantics=("parallel",),
            vmem_limit_bytes=32 * 1024 * 1024,
        ),
    )(h2, x2, w_big, wq_h, b_big)

    return out2.reshape(B, n_head, H)   # free reshape back to PyTorch layout


# -----------------------------------------------------------------------------
# Pure-JAX reference (matches the PyTorch forward exactly)
# -----------------------------------------------------------------------------
def multi_gru_ref(h, x, params):
    wz, bz, wr, br, wq, bq = params

    def lin(w, b, v):  # v: (B, n_head, D_in)
        return jnp.einsum('bhi,hio->bho', v, w) + b[None]

    hx = jnp.concatenate([h, x], axis=-1)
    z = jax.nn.sigmoid(lin(wz, bz, hx))
    r = jax.nn.sigmoid(lin(wr, br, hx))
    q = jnp.tanh(lin(wq, bq, jnp.concatenate([r * h, x], axis=-1)))
    return (1.0 - z) * h + z * q


def init_params(key, n_head, hidden_dim, input_dim):
    in_dim = hidden_dim + input_dim
    ks = jax.random.split(key, 6)
    scale = 1.0 / jnp.sqrt(jnp.float32(in_dim))
    wz = jax.random.normal(ks[0], (n_head, in_dim, hidden_dim), jnp.float32) * scale
    wr = jax.random.normal(ks[1], (n_head, in_dim, hidden_dim), jnp.float32) * scale
    wq = jax.random.normal(ks[2], (n_head, in_dim, hidden_dim), jnp.float32) * scale
    bz = jax.random.normal(ks[3], (n_head, hidden_dim), jnp.float32) * 0.1
    br = jax.random.normal(ks[4], (n_head, hidden_dim), jnp.float32) * 0.1
    bq = jax.random.normal(ks[5], (n_head, hidden_dim), jnp.float32) * 0.1
    return (wz, bz, wr, br, wq, bq)


# -----------------------------------------------------------------------------
# Test
# -----------------------------------------------------------------------------
if __name__ == "__main__":
    key = jax.random.PRNGKey(0)
    fwd = jax.jit(multi_gru)

    cases = [
        # (B, n_head, hidden_dim, input_dim) — small, lane/MXU-friendly shapes
        (8, 4, 32, 128),
        # PyTorch defaults (n_head=24, hidden_dim=12, input_dim=256), small B
        (16, 24, 12, 256),
    ]

    for i, (B, n_head, hidden_dim, input_dim) in enumerate(cases):
        k_h, k_x, k_p = jax.random.split(jax.random.fold_in(key, i), 3)
        h = jax.random.normal(k_h, (B, n_head, hidden_dim), jnp.float32)
        x = jax.random.normal(k_x, (B, n_head, input_dim), jnp.float32)
        params = init_params(k_p, n_head, hidden_dim, input_dim)
        ref = multi_gru_ref(h, x, params)

        # f32 weight stream: matches the reference to tight tolerance.
        out_f32 = jax.block_until_ready(fwd(h, x, pack_params(params, jnp.float32)))
        assert out_f32.shape == (B, n_head, hidden_dim)
        assert jnp.allclose(out_f32, ref, atol=1e-5, rtol=1e-5), \
            f"f32 mismatch vs reference (case {i})"

        # bf16 weight stream (default fast path): halves HBM weight traffic;
        # accumulation stays f32, so error is at the ~1e-3 level.
        out_bf16 = jax.block_until_ready(fwd(h, x, pack_params(params, jnp.bfloat16)))
        assert out_bf16.shape == (B, n_head, hidden_dim)
        assert jnp.allclose(out_bf16, ref, atol=3e-2, rtol=3e-2), \
            f"bf16 mismatch vs reference (case {i})"

    print("KERNEL_OK")
</pallas_src>

<mosaic_0001>
module attributes {stable_mosaic.version = 11 : i64} {
  func.func @_multi_gru_kernel(%arg0: i32, %arg1: memref<8x128xf32, #tpu.memory_space<vmem>>, %arg2: memref<8x512xf32, #tpu.memory_space<vmem>>, %arg3: memref<4x160x96xf32, #tpu.memory_space<vmem>>, %arg4: memref<4x32x32xf32, #tpu.memory_space<vmem>>, %arg5: memref<4x1x96xf32, #tpu.memory_space<vmem>>, %arg6: memref<8x128xf32, #tpu.memory_space<vmem>>) attributes {dimension_semantics = [#tpu.dimension_semantics<parallel>], iteration_bounds = array<i64: 1>, scalar_prefetch = 0 : i64, scratch_operands = 0 : i64, tpu.core_type = #tpu.core_type<tc>, window_params = [{transform_indices = @transform_0, window_bounds = array<i64: 8, 128>}, {transform_indices = @transform_1, window_bounds = array<i64: 8, 512>}, {pipeline_mode = #tpu.pipeline_mode<synchronous>, transform_indices = @transform_2, window_bounds = array<i64: 4, 160, 96>}, {pipeline_mode = #tpu.pipeline_mode<synchronous>, transform_indices = @transform_3, window_bounds = array<i64: 4, 32, 32>}, {pipeline_mode = #tpu.pipeline_mode<synchronous>, transform_indices = @transform_4, window_bounds = array<i64: 4, 1, 96>}, {transform_indices = @transform_5, window_bounds = array<i64: 8, 128>}]} {
    %c0 = arith.constant 0 : index
    %c0_0 = arith.constant 0 : index
    %0 = vector.load %arg1[%c0, %c0_0] : memref<8x128xf32, #tpu.memory_space<vmem>>, vector<8x32xf32>
    %c0_1 = arith.constant 0 : index
    %c0_2 = arith.constant 0 : index
    %1 = vector.load %arg2[%c0_1, %c0_2] : memref<8x512xf32, #tpu.memory_space<vmem>>, vector<8x128xf32>
    %2 = tpu.concatenate %0, %1 in 1 : vector<8x32xf32>, vector<8x128xf32> -> vector<8x160xf32>
    %c0_3 = arith.constant 0 : index
    %c0_4 = arith.constant 0 : index
    %c0_5 = arith.constant 0 : index
    %3 = vector.load %arg3[%c0_3, %c0_4, %c0_5] : memref<4x160x96xf32, #tpu.memory_space<vmem>>, vector<1x160x96xf32>
    %4 = vector.shape_cast %3 : vector<1x160x96xf32> to vector<160x96xf32>
    %cst = arith.constant dense<0.000000e+00> : vector<8x96xf32>
    %5 = tpu.matmul %2, %4, %cst {dimension_numbers = #tpu.dot_dimension_numbers<[1], [0], [0], [1], [0, 0, 1, 1], [], []>} : vector<8x160xf32>, vector<160x96xf32>, vector<8x96xf32> -> vector<8x96xf32>
    %c0_6 = arith.constant 0 : index
    %c0_7 = arith.constant 0 : index
    %c0_8 = arith.constant 0 : index
    %6 = vector.load %arg5[%c0_6, %c0_7, %c0_8] : memref<4x1x96xf32, #tpu.memory_space<vmem>>, vector<1x1x96xf32>
    %7 = vector.shape_cast %6 : vector<1x1x96xf32> to vector<1x96xf32>
    %8 = vector.broadcast %7 : vector<1x96xf32> to vector<8x96xf32>
    %9 = arith.addf %5, %8 : vector<8x96xf32>
    %10 = vector.extract_strided_slice %9 {offsets = [0, 0], sizes = [8, 32], strides = [1, 1]} : vector<8x96xf32> to vector<8x32xf32>
    %11 = arith.negf %10 : vector<8x32xf32>
    %12 = math.exp %11 : vector<8x32xf32>
    %cst_9 = arith.constant 1.000000e+00 : f32
    %13 = vector.broadcast %cst_9 : f32 to vector<8x32xf32>
    %14 = arith.addf %13, %12 : vector<8x32xf32>
    %15 = arith.divf %13, %14 : vector<8x32xf32>
    %16 = vector.extract_strided_slice %9 {offsets = [0, 32], sizes = [8, 32], strides = [1, 1]} : vector<8x96xf32> to vector<8x32xf32>
    %17 = arith.negf %16 : vector<8x32xf32>
    %18 = math.exp %17 : vector<8x32xf32>
    %cst_10 = arith.constant 1.000000e+00 : f32
    %19 = vector.broadcast %cst_10 : f32 to vector<8x32xf32>
    %20 = arith.addf %19, %18 : vector<8x32xf32>
    %21 = arith.divf %19, %20 : vector<8x32xf32>
    %22 = vector.extract_strided_slice %9 {offsets = [0, 64], sizes = [8, 32], strides = [1, 1]} : vector<8x96xf32> to vector<8x32xf32>
    %c0_11 = arith.constant 0 : index
    %c0_12 = arith.constant 0 : index
    %c0_13 = arith.constant 0 : index
    %23 = vector.load %arg4[%c0_11, %c0_12, %c0_13] : memref<4x32x32xf32, #tpu.memory_space<vmem>>, vector<1x32x32xf32>
    %24 = vector.shape_cast %23 : vector<1x32x32xf32> to vector<32x32xf32>
    %25 = arith.mulf %21, %0 : vector<8x32xf32>
    %cst_14 = arith.constant dense<0.000000e+00> : vector<8x32xf32>
    %26 = tpu.matmul %25, %24, %cst_14 {dimension_numbers = #tpu.dot_dimension_numbers<[1], [0], [0], [1], [0, 0, 1, 1], [], []>} : vector<8x32xf32>, vector<32x32xf32>, vector<8x32xf32> -> vector<8x32xf32>
    %27 = arith.addf %26, %22 : vector<8x32xf32>
    %28 = math.tanh %27 : vector<8x32xf32>
    %cst_15 = arith.constant 1.000000e+00 : f32
    %29 = vector.broadcast %cst_15 : f32 to vector<8x32xf32>
    %30 = arith.subf %29, %15 : vector<8x32xf32>
    %31 = arith.mulf %30, %0 : vector<8x32xf32>
    %32 = arith.mulf %15, %28 : vector<8x32xf32>
    %33 = arith.addf %31, %32 : vector<8x32xf32>
    %c0_16 = arith.constant 0 : index
    %c32 = arith.constant 32 : index
    %34 = vector.load %arg1[%c0_16, %c32] : memref<8x128xf32, #tpu.memory_space<vmem>>, vector<8x32xf32>
    %c0_17 = arith.constant 0 : index
    %c128 = arith.constant 128 : index
    %35 = vector.load %arg2[%c0_17, %c128] : memref<8x512xf32, #tpu.memory_space<vmem>>, vector<8x128xf32>
    %36 = tpu.concatenate %34, %35 in 1 : vector<8x32xf32>, vector<8x128xf32> -> vector<8x160xf32>
    %c1 = arith.constant 1 : index
    %c0_18 = arith.constant 0 : index
    %c0_19 = arith.constant 0 : index
    %37 = vector.load %arg3[%c1, %c0_18, %c0_19] : memref<4x160x96xf32, #tpu.memory_space<vmem>>, vector<1x160x96xf32>
    %38 = vector.shape_cast %37 : vector<1x160x96xf32> to vector<160x96xf32>
    %cst_20 = arith.constant dense<0.000000e+00> : vector<8x96xf32>
    %39 = tpu.matmul %36, %38, %cst_20 {dimension_numbers = #tpu.dot_dimension_numbers<[1], [0], [0], [1], [0, 0, 1, 1], [], []>} : vector<8x160xf32>, vector<160x96xf32>, vector<8x96xf32> -> vector<8x96xf32>
    %c1_21 = arith.constant 1 : index
    %c0_22 = arith.constant 0 : index
    %c0_23 = arith.constant 0 : index
    %40 = vector.load %arg5[%c1_21, %c0_22, %c0_23] : memref<4x1x96xf32, #tpu.memory_space<vmem>>, vector<1x1x96xf32>
    %41 = vector.shape_cast %40 : vector<1x1x96xf32> to vector<1x96xf32>
    %42 = vector.broadcast %41 : vector<1x96xf32> to vector<8x96xf32>
    %43 = arith.addf %39, %42 : vector<8x96xf32>
    %44 = vector.extract_strided_slice %43 {offsets = [0, 0], sizes = [8, 32], strides = [1, 1]} : vector<8x96xf32> to vector<8x32xf32>
    %45 = arith.negf %44 : vector<8x32xf32>
    %46 = math.exp %45 : vector<8x32xf32>
    %cst_24 = arith.constant 1.000000e+00 : f32
    %47 = vector.broadcast %cst_24 : f32 to vector<8x32xf32>
    %48 = arith.addf %47, %46 : vector<8x32xf32>
    %49 = arith.divf %47, %48 : vector<8x32xf32>
    %50 = vector.extract_strided_slice %43 {offsets = [0, 32], sizes = [8, 32], strides = [1, 1]} : vector<8x96xf32> to vector<8x32xf32>
    %51 = arith.negf %50 : vector<8x32xf32>
    %52 = math.exp %51 : vector<8x32xf32>
    %cst_25 = arith.constant 1.000000e+00 : f32
    %53 = vector.broadcast %cst_25 : f32 to vector<8x32xf32>
    %54 = arith.addf %53, %52 : vector<8x32xf32>
    %55 = arith.divf %53, %54 : vector<8x32xf32>
    %56 = vector.extract_strided_slice %43 {offsets = [0, 64], sizes = [8, 32], strides = [1, 1]} : vector<8x96xf32> to vector<8x32xf32>
    %c1_26 = arith.constant 1 : index
    %c0_27 = arith.constant 0 : index
    %c0_28 = arith.constant 0 : index
    %57 = vector.load %arg4[%c1_26, %c0_27, %c0_28] : memref<4x32x32xf32, #tpu.memory_space<vmem>>, vector<1x32x32xf32>
    %58 = vector.shape_cast %57 : vector<1x32x32xf32> to vector<32x32xf32>
    %59 = arith.mulf %55, %34 : vector<8x32xf32>
    %cst_29 = arith.constant dense<0.000000e+00> : vector<8x32xf32>
    %60 = tpu.matmul %59, %58, %cst_29 {dimension_numbers = #tpu.dot_dimension_numbers<[1], [0], [0], [1], [0, 0, 1, 1], [], []>} : vector<8x32xf32>, vector<32x32xf32>, vector<8x32xf32> -> vector<8x32xf32>
    %61 = arith.addf %60, %56 : vector<8x32xf32>
    %62 = math.tanh %61 : vector<8x32xf32>
    %cst_30 = arith.constant 1.000000e+00 : f32
    %63 = vector.broadcast %cst_30 : f32 to vector<8x32xf32>
    %64 = arith.subf %63, %49 : vector<8x32xf32>
    %65 = arith.mulf %64, %34 : vector<8x32xf32>
    %66 = arith.mulf %49, %62 : vector<8x32xf32>
    %67 = arith.addf %65, %66 : vector<8x32xf32>
    %c0_31 = arith.constant 0 : index
    %c64 = arith.constant 64 : index
    %68 = vector.load %arg1[%c0_31, %c64] : memref<8x128xf32, #tpu.memory_space<vmem>>, vector<8x32xf32>
    %c0_32 = arith.constant 0 : index
    %c256 = arith.constant 256 : index
    %69 = vector.load %arg2[%c0_32, %c256] : memref<8x512xf32, #tpu.memory_space<vmem>>, vector<8x128xf32>
    %70 = tpu.concatenate %68, %69 in 1 : vector<8x32xf32>, vector<8x128xf32> -> vector<8x160xf32>
    %c2 = arith.constant 2 : index
    %c0_33 = arith.constant 0 : index
    %c0_34 = arith.constant 0 : index
    %71 = vector.load %arg3[%c2, %c0_33, %c0_34] : memref<4x160x96xf32, #tpu.memory_space<vmem>>, vector<1x160x96xf32>
    %72 = vector.shape_cast %71 : vector<1x160x96xf32> to vector<160x96xf32>
    %cst_35 = arith.constant dense<0.000000e+00> : vector<8x96xf32>
    %73 = tpu.matmul %70, %72, %cst_35 {dimension_numbers = #tpu.dot_dimension_numbers<[1], [0], [0], [1], [0, 0, 1, 1], [], []>} : vector<8x160xf32>, vector<160x96xf32>, vector<8x96xf32> -> vector<8x96xf32>
    %c2_36 = arith.constant 2 : index
    %c0_37 = arith.constant 0 : index
    %c0_38 = arith.constant 0 : index
    %74 = vector.load %arg5[%c2_36, %c0_37, %c0_38] : memref<4x1x96xf32, #tpu.memory_space<vmem>>, vector<1x1x96xf32>
    %75 = vector.shape_cast %74 : vector<1x1x96xf32> to vector<1x96xf32>
    %76 = vector.broadcast %75 : vector<1x96xf32> to vector<8x96xf32>
    %77 = arith.addf %73, %76 : vector<8x96xf32>
    %78 = vector.extract_strided_slice %77 {offsets = [0, 0], sizes = [8, 32], strides = [1, 1]} : vector<8x96xf32> to vector<8x32xf32>
    %79 = arith.negf %78 : vector<8x32xf32>
    %80 = math.exp %79 : vector<8x32xf32>
    %cst_39 = arith.constant 1.000000e+00 : f32
    %81 = vector.broadcast %cst_39 : f32 to vector<8x32xf32>
    %82 = arith.addf %81, %80 : vector<8x32xf32>
    %83 = arith.divf %81, %82 : vector<8x32xf32>
    %84 = vector.extract_strided_slice %77 {offsets = [0, 32], sizes = [8, 32], strides = [1, 1]} : vector<8x96xf32> to vector<8x32xf32>
    %85 = arith.negf %84 : vector<8x32xf32>
    %86 = math.exp %85 : vector<8x32xf32>
    %cst_40 = arith.constant 1.000000e+00 : f32
    %87 = vector.broadcast %cst_40 : f32 to vector<8x32xf32>
    %88 = arith.addf %87, %86 : vector<8x32xf32>
    %89 = arith.divf %87, %88 : vector<8x32xf32>
    %90 = vector.extract_strided_slice %77 {offsets = [0, 64], sizes = [8, 32], strides = [1, 1]} : vector<8x96xf32> to vector<8x32xf32>
    %c2_41 = arith.constant 2 : index
    %c0_42 = arith.constant 0 : index
    %c0_43 = arith.constant 0 : index
    %91 = vector.load %arg4[%c2_41, %c0_42, %c0_43] : memref<4x32x32xf32, #tpu.memory_space<vmem>>, vector<1x32x32xf32>
    %92 = vector.shape_cast %91 : vector<1x32x32xf32> to vector<32x32xf32>
    %93 = arith.mulf %89, %68 : vector<8x32xf32>
    %cst_44 = arith.constant dense<0.000000e+00> : vector<8x32xf32>
    %94 = tpu.matmul %93, %92, %cst_44 {dimension_numbers = #tpu.dot_dimension_numbers<[1], [0], [0], [1], [0, 0, 1, 1], [], []>} : vector<8x32xf32>, vector<32x32xf32>, vector<8x32xf32> -> vector<8x32xf32>
    %95 = arith.addf %94, %90 : vector<8x32xf32>
    %96 = math.tanh %95 : vector<8x32xf32>
    %cst_45 = arith.constant 1.000000e+00 : f32
    %97 = vector.broadcast %cst_45 : f32 to vector<8x32xf32>
    %98 = arith.subf %97, %83 : vector<8x32xf32>
    %99 = arith.mulf %98, %68 : vector<8x32xf32>
    %100 = arith.mulf %83, %96 : vector<8x32xf32>
    %101 = arith.addf %99, %100 : vector<8x32xf32>
    %c0_46 = arith.constant 0 : index
    %c96 = arith.constant 96 : index
    %102 = vector.load %arg1[%c0_46, %c96] : memref<8x128xf32, #tpu.memory_space<vmem>>, vector<8x32xf32>
    %c0_47 = arith.constant 0 : index
    %c384 = arith.constant 384 : index
    %103 = vector.load %arg2[%c0_47, %c384] : memref<8x512xf32, #tpu.memory_space<vmem>>, vector<8x128xf32>
    %104 = tpu.concatenate %102, %103 in 1 : vector<8x32xf32>, vector<8x128xf32> -> vector<8x160xf32>
    %c3 = arith.constant 3 : index
    %c0_48 = arith.constant 0 : index
    %c0_49 = arith.constant 0 : index
    %105 = vector.load %arg3[%c3, %c0_48, %c0_49] : memref<4x160x96xf32, #tpu.memory_space<vmem>>, vector<1x160x96xf32>
    %106 = vector.shape_cast %105 : vector<1x160x96xf32> to vector<160x96xf32>
    %cst_50 = arith.constant dense<0.000000e+00> : vector<8x96xf32>
    %107 = tpu.matmul %104, %106, %cst_50 {dimension_numbers = #tpu.dot_dimension_numbers<[1], [0], [0], [1], [0, 0, 1, 1], [], []>} : vector<8x160xf32>, vector<160x96xf32>, vector<8x96xf32> -> vector<8x96xf32>
    %c3_51 = arith.constant 3 : index
    %c0_52 = arith.constant 0 : index
    %c0_53 = arith.constant 0 : index
    %108 = vector.load %arg5[%c3_51, %c0_52, %c0_53] : memref<4x1x96xf32, #tpu.memory_space<vmem>>, vector<1x1x96xf32>
    %109 = vector.shape_cast %108 : vector<1x1x96xf32> to vector<1x96xf32>
    %110 = vector.broadcast %109 : vector<1x96xf32> to vector<8x96xf32>
    %111 = arith.addf %107, %110 : vector<8x96xf32>
    %112 = vector.extract_strided_slice %111 {offsets = [0, 0], sizes = [8, 32], strides = [1, 1]} : vector<8x96xf32> to vector<8x32xf32>
    %113 = arith.negf %112 : vector<8x32xf32>
    %114 = math.exp %113 : vector<8x32xf32>
    %cst_54 = arith.constant 1.000000e+00 : f32
    %115 = vector.broadcast %cst_54 : f32 to vector<8x32xf32>
    %116 = arith.addf %115, %114 : vector<8x32xf32>
    %117 = arith.divf %115, %116 : vector<8x32xf32>
    %118 = vector.extract_strided_slice %111 {offsets = [0, 32], sizes = [8, 32], strides = [1, 1]} : vector<8x96xf32> to vector<8x32xf32>
    %119 = arith.negf %118 : vector<8x32xf32>
    %120 = math.exp %119 : vector<8x32xf32>
    %cst_55 = arith.constant 1.000000e+00 : f32
    %121 = vector.broadcast %cst_55 : f32 to vector<8x32xf32>
    %122 = arith.addf %121, %120 : vector<8x32xf32>
    %123 = arith.divf %121, %122 : vector<8x32xf32>
    %124 = vector.extract_strided_slice %111 {offsets = [0, 64], sizes = [8, 32], strides = [1, 1]} : vector<8x96xf32> to vector<8x32xf32>
    %c3_56 = arith.constant 3 : index
    %c0_57 = arith.constant 0 : index
    %c0_58 = arith.constant 0 : index
    %125 = vector.load %arg4[%c3_56, %c0_57, %c0_58] : memref<4x32x32xf32, #tpu.memory_space<vmem>>, vector<1x32x32xf32>
    %126 = vector.shape_cast %125 : vector<1x32x32xf32> to vector<32x32xf32>
    %127 = arith.mulf %123, %102 : vector<8x32xf32>
    %cst_59 = arith.constant dense<0.000000e+00> : vector<8x32xf32>
    %128 = tpu.matmul %127, %126, %cst_59 {dimension_numbers = #tpu.dot_dimension_numbers<[1], [0], [0], [1], [0, 0, 1, 1], [], []>} : vector<8x32xf32>, vector<32x32xf32>, vector<8x32xf32> -> vector<8x32xf32>
    %129 = arith.addf %128, %124 : vector<8x32xf32>
    %130 = math.tanh %129 : vector<8x32xf32>
    %cst_60 = arith.constant 1.000000e+00 : f32
    %131 = vector.broadcast %cst_60 : f32 to vector<8x32xf32>
    %132 = arith.subf %131, %117 : vector<8x32xf32>
    %133 = arith.mulf %132, %102 : vector<8x32xf32>
    %134 = arith.mulf %117, %130 : vector<8x32xf32>
    %135 = arith.addf %133, %134 : vector<8x32xf32>
    %136 = tpu.concatenate %33, %67, %101, %135 in 1 : vector<8x32xf32>, vector<8x32xf32>, vector<8x32xf32>, vector<8x32xf32> -> vector<8x128xf32>
    %c0_61 = arith.constant 0 : index
    %c0_62 = arith.constant 0 : index
    %137 = vector.load %arg6[%c0_61, %c0_62] : memref<8x128xf32, #tpu.memory_space<vmem>>, vector<8x128xf32>
    tpu.vector_store %arg6[%c0_61, %c0_62], %136 {strides = array<i32>} : memref<8x128xf32, #tpu.memory_space<vmem>>, vector<8x128xf32>,
    return
  }
  func.func @transform_0(%arg0: i32) -> (i32, i32) {
    %c0_i32 = arith.constant 0 : i32
    %c0_i32_0 = arith.constant 0 : i32
    return %arg0, %c0_i32 : i32, i32
  }
  func.func @transform_1(%arg0: i32) -> (i32, i32) {
    %c0_i32 = arith.constant 0 : i32
    %c0_i32_0 = arith.constant 0 : i32
    return %arg0, %c0_i32 : i32, i32
  }
  func.func @transform_2(%arg0: i32) -> (i32, i32, i32) {
    %c0_i32 = arith.constant 0 : i32
    %c0_i32_0 = arith.constant 0 : i32
    %c0_i32_1 = arith.constant 0 : i32
    %c0_i32_2 = arith.constant 0 : i32
    return %c0_i32, %c0_i32_0, %c0_i32_1 : i32, i32, i32
  }
  func.func @transform_3(%arg0: i32) -> (i32, i32, i32) {
    %c0_i32 = arith.constant 0 : i32
    %c0_i32_0 = arith.constant 0 : i32
    %c0_i32_1 = arith.constant 0 : i32
    %c0_i32_2 = arith.constant 0 : i32
    return %c0_i32, %c0_i32_0, %c0_i32_1 : i32, i32, i32
  }
  func.func @transform_4(%arg0: i32) -> (i32, i32, i32) {
    %c0_i32 = arith.constant 0 : i32
    %c0_i32_0 = arith.constant 0 : i32
    %c0_i32_1 = arith.constant 0 : i32
    %c0_i32_2 = arith.constant 0 : i32
    return %c0_i32, %c0_i32_0, %c0_i32_1 : i32, i32, i32
  }
  func.func @transform_5(%arg0: i32) -> (i32, i32) {
    %c0_i32 = arith.constant 0 : i32
    %c0_i32_0 = arith.constant 0 : i32
    return %arg0, %c0_i32 : i32, i32
  }
}

</mosaic_0001>

<llo_original>
// kernel: multi_gru.1
$region0: #{multi_gru.1}
  #allocation0 [shape = 'u32[]', space=smem, size = 0x4, offset = 0x4, fixed_abs, tag = 'smem constant byte address 0x4 - core index']
  #allocation1 [shape = 'u32[144,128]{1,0:T(1,128)}', space=vmem, size = 0x12000, scoped, tag = 'internal scratch']
  %s0 = inlined_call_operand.vmem [shape: f32[8,128], index: 0, kind: input, shape index: {}]
  %s1 = inlined_call_operand.vmem [shape: f32[8,512], index: 1, kind: input, shape index: {}]
  %s2 = inlined_call_operand.hbm [shape: f32[4,160,96], index: 2, kind: input, shape index: {}]
  %s3 = inlined_call_operand.hbm [shape: f32[4,32,32], index: 3, kind: input, shape index: {}]
  %s4 = inlined_call_operand.vmem [shape: f32[4,1,96], index: 4, kind: input, shape index: {}]
  %s5 = inlined_call_operand.vmem [shape: f32[8,128], index: 5, kind: output, shape index: {}]
  %s6 = sld [smem:[#allocation0]]
  $region38: #{multi_gru.1} parent=0
    _
  %s8 = ssub.s32 1, %s6
  %s9 = scalar_select 0, %s8, %s6
  $region1: #{multi_gru.1} parent=0
    #allocation2 [shape = 'u8[327680]{0}', space=vmem, size = 0x50000, scoped, tag = 'input window, operand 2, single buffered']
    #allocation3 [shape = 's32[1]{0}', space=sflag, size = 0x4, scoped, tag = 'scoped memory for multi_gru.1']
    #allocation4 [shape = 'u8[65536]{0}', space=vmem, size = 0x10000, scoped, tag = 'input window, operand 3, single buffered']
    #allocation5 [shape = 's32[1]{0}', space=sflag, size = 0x4, scoped, tag = 'scoped memory for multi_gru.1']
    %10 = vsyncpa [#allocation3], 0
    %11 = vsyncpa [#allocation5], 0
    // Predicated region
    $region2: #{multi_gru.1} parent=1 // pred_check
      _
    $region3: #{multi_gru.1} parent=1 // pred_check_branch
      %13 = sbr.rel (0) target = $region5
    $region4: #{multi_gru.1} parent=1 // pred_region
      _
    $region5: #{multi_gru.1} parent=1 // pred_fallthru
      _
    // Predicated region
    $region6: #{multi_gru.1} parent=1 // pred_check
      _
    $region7: #{multi_gru.1} parent=1 // pred_check_branch
      %15 = sbr.rel (0) target = $region9
    $region8: #{multi_gru.1} parent=1 // pred_region
      _
    $region9: #{multi_gru.1} parent=1 // pred_fallthru
      _
    // Predicated region
    $region10: #{multi_gru.1} parent=1 // pred_check
      _
    $region11: #{multi_gru.1} parent=1 // pred_check_branch
      %17 = sbr.rel (0) target = $region13
    $region12: #{multi_gru.1} parent=1 // pred_region
      %s19 = ssub.s32 10240, 10240
      %20 = vsyncadd [#allocation3], %s19
      %s21 = sshll.u32 [#allocation2], 4
      %s22 = int_to_ptr.vmem [resolvable:$true] %s21
      %27 = dma.hbm_to_vmem [thread:$0]  %s2, 10240, %s22, [#allocation3], 128, 128, 8
    $region13: #{multi_gru.1} parent=1 // pred_fallthru
      _
    // Predicated region
    $region14: #{multi_gru.1} parent=1 // pred_check
      _
    $region15: #{multi_gru.1} parent=1 // pred_check_branch
      %29 = sbr.rel (0) target = $region17
    $region16: #{multi_gru.1} parent=1 // pred_region
      %s31 = ssub.s32 2048, 2048
      %32 = vsyncadd [#allocation5], %s31
      %s33 = sshll.u32 [#allocation4], 4
      %s34 = int_to_ptr.vmem [resolvable:$true] %s33
      %39 = dma.hbm_to_vmem [thread:$0]  %s3, 2048, %s34, [#allocation5], 128, 128, 8
    $region17: #{multi_gru.1} parent=1 // pred_fallthru
      _
    // Predicated region
    $region18: #{multi_gru.1} parent=1 // pred_check
      _
    $region19: #{multi_gru.1} parent=1 // pred_check_branch
      %41 = sbr.rel (0) target = $region21
    $region20: #{multi_gru.1} parent=1 // pred_region
      _
    $region21: #{multi_gru.1} parent=1 // pred_fallthru
      _
    // Predicated region
    $region22: #{multi_gru.1} parent=1 // pred_check
      _
    $region23: #{multi_gru.1} parent=1 // pred_check_branch
      %43 = sbr.rel (0) target = $region25
    $region24: #{multi_gru.1} parent=1 // pred_region
      %44 = dma.done [#allocation3], 10240
    $region25: #{multi_gru.1} parent=1 // pred_fallthru
      _
    // Predicated region
    $region26: #{multi_gru.1} parent=1 // pred_check
      _
    $region27: #{multi_gru.1} parent=1 // pred_check_branch
      %46 = sbr.rel (0) target = $region29
    $region28: #{multi_gru.1} parent=1 // pred_region
      %47 = dma.done [#allocation5], 2048
    $region29: #{multi_gru.1} parent=1 // pred_fallthru
      _
    %v48 = vld [vmem:[%s0] sm:$0xff]
    %v49 = vld [vmem:[%s1] sm:$0xff]
    %51 = vrot.lane.b32.xlu0 %v49, 32
    %v52 = vpop.permute.xlu0 %51
    %vm54 = vcmask 261120
    %v55 = vsel %vm54, %v48, %v52
    %v56 = vld [vmem:[#allocation2] sm:$0xff]
    %v57 = vld [vmem:[#allocation2 + $0x8] sm:$0xff]
    %v58 = vld [vmem:[#allocation2 + $0x10] sm:$0xff]
    %v59 = vld [vmem:[#allocation2 + $0x18] sm:$0xff]
    %v60 = vld [vmem:[#allocation2 + $0x20] sm:$0xff]
    %v61 = vld [vmem:[#allocation2 + $0x28] sm:$0xff]
    %v62 = vld [vmem:[#allocation2 + $0x30] sm:$0xff]
    %v63 = vld [vmem:[#allocation2 + $0x38] sm:$0xff]
    %v64 = vld [vmem:[#allocation2 + $0x40] sm:$0xff]
    %v65 = vld [vmem:[#allocation2 + $0x48] sm:$0xff]
    %v66 = vld [vmem:[#allocation2 + $0x50] sm:$0xff]
    %v67 = vld [vmem:[#allocation2 + $0x58] sm:$0xff]
    %v68 = vld [vmem:[#allocation2 + $0x60] sm:$0xff]
    %v69 = vld [vmem:[#allocation2 + $0x68] sm:$0xff]
    %v70 = vld [vmem:[#allocation2 + $0x70] sm:$0xff]
    %v71 = vld [vmem:[#allocation2 + $0x78] sm:$0xff]
    %v72 = vld [vmem:[#allocation2 + $0x80] sm:$0xff]
    %v73 = vld [vmem:[#allocation2 + $0x88] sm:$0xff]
    %v74 = vld [vmem:[#allocation2 + $0x90] sm:$0xff]
    %v75 = vld [vmem:[#allocation2 + $0x98] sm:$0xff]
    %v76 = vld [vmem:[%s4] sm:$0x1]
    %v78 = vlaneseq
    %v79 = vshrl.u32 %v78, 7
    %v80 = vsub.s32 0, %v79
    %v81 = vrot.slane %v76, %v80
    %v83 = vsel %vm54, %v52, 0
    %85 = vmatprep.subr.mxu0 0.0
    %86 = vmatpush1.msra.mxu0 %v56
    %87 = vmatprep.subr.mxu0 0.0
    %88 = vmatpush1.msra.mxu0 %v57
    %89 = vmatprep.subr.mxu0 0.0
    %90 = vmatpush1.msra.mxu0 %v58
    %91 = vmatprep.subr.mxu0 0.0
    %92 = vmatpush1.msra.mxu0 %v59
    %93 = vmatprep.subr.mxu0 0.0
    %94 = vmatpush1.msra.mxu0 %v60
    %95 = vmatprep.subr.mxu0 0.0
    %96 = vmatpush1.msra.mxu0 %v61
    %97 = vmatprep.subr.mxu0 0.0
    %98 = vmatpush1.msra.mxu0 %v62
    %99 = vmatprep.subr.mxu0 0.0
    %100 = vmatpush1.msra.mxu0 %v63
    %101 = vmatprep.subr.mxu0 0.0
    %102 = vmatpush1.msra.mxu0 %v64
    %103 = vmatprep.subr.mxu0 0.0
    %104 = vmatpush1.msra.mxu0 %v65
    %105 = vmatprep.subr.mxu0 0.0
    %106 = vmatpush1.msra.mxu0 %v66
    %107 = vmatprep.subr.mxu0 0.0
    %108 = vmatpush1.msra.mxu0 %v67
    %109 = vmatprep.subr.mxu0 0.0
    %110 = vmatpush1.msra.mxu0 %v68
    %111 = vmatprep.subr.mxu0 0.0
    %112 = vmatpush1.msra.mxu0 %v69
    %113 = vmatprep.subr.mxu0 0.0
    %114 = vmatpush1.msra.mxu0 %v70
    %115 = vmatprep.subr.mxu0 0.0
    %116 = vmatpush1.msra.mxu0 %v71
    %117 = vmatprep.subr.mxu0 0.0
    %118 = vmatpush1.msra.mxu0 %v72
    %119 = vmatprep.subr.mxu0 0.0
    %120 = vmatpush1.msra.mxu0 %v73
    %121 = vmatprep.subr.mxu0 0.0
    %122 = vmatpush1.msra.mxu0 %v74
    %123 = vmatprep.subr.mxu0 0.0
    %124 = vmatpush1.msra.mxu0 %v75
    %125 = vmatprep.subr.mxu0 0.0
    %126 = vmatpush1.msra.mxu0 0.0
    %127 = vmatprep.subr.mxu0 0.0
    %128 = vmatpush1.msra.mxu0 0.0
    %129 = vmatprep.subr.mxu0 0.0
    %130 = vmatpush1.msra.mxu0 0.0
    %131 = vmatprep.subr.mxu0 0.0
    %132 = vmatpush1.msra.mxu0 0.0
    %133 = vmatprep.subr.mxu0 0.0
    %134 = vmatpush1.msra.mxu0 0.0
    %135 = vmatprep.subr.mxu0 0.0
    %136 = vmatpush1.msra.mxu0 0.0
    %137 = vmatprep.subr.mxu0 0.0
    %138 = vmatpush1.msra.mxu0 0.0
    %139 = vmatprep.subr.mxu0 0.0
    %140 = vmatpush1.msra.mxu0 0.0
    %141 = vmatprep.subr.mxu0 0.0
    %142 = vmatpush1.msra.mxu0 0.0
    %143 = vmatprep.subr.mxu0 0.0
    %144 = vmatpush1.msra.mxu0 0.0
    %145 = vmatprep.subr.mxu0 0.0
    %146 = vmatpush1.msra.mxu0 0.0
    %147 = vmatprep.subr.mxu0 0.0
    %148 = vmatpush1.msra.mxu0 0.0
    %149 = vmatprep.mubr.f32.mxu0 %v83
    %150 = vmatmul.mubr.f32.gmra.mrb[0].mxu0 %v55
    %v151 = vpop.f32.mrb[0].mxu0
    %v152 = vadd.f32 %v81, %v151
    %v153 = vpop.f32.mrb[0].mxu0
    %154 = vdwg.mxu0
    %v155 = vxor.u32 %v152, 2147483648
    %v156 = vmul.f32 %v155, 1.442695
    %v157 = vpow.pop %v156
    %v158 = vadd.f32 %v157, 1.0
    %v159 = vrcp.pop %v158
    %v160 = vmul.f32 1.0, %v159
    %v161 = vld [vmem:[#allocation4] sm:$0xff]
    %v162 = vld [vmem:[#allocation4 + $0x8] sm:$0xff]
    %v163 = vld [vmem:[#allocation4 + $0x10] sm:$0xff]
    %v164 = vld [vmem:[#allocation4 + $0x18] sm:$0xff]
    %166 = vrot.lane.b32.xlu0 %v48, 32
    %v167 = vpop.permute.xlu0 %166
    %v169 = vmul.f32 %v160, %v167
    %171 = vrot.lane.b32.xlu0 %v169, 96
    %v172 = vpop.permute.xlu0 %171
    %174 = vrot.lane.b32.xlu0 %v152, 64
    %v175 = vpop.permute.xlu0 %174
    %v177 = vsel %vm54, %v172, 0
    %179 = vmatprep.subr.mxu0 0.0
    %180 = vmatpush1.msra.mxu0 %v161
    %181 = vmatprep.subr.mxu0 0.0
    %182 = vmatpush1.msra.mxu0 %v162
    %183 = vmatprep.subr.mxu0 0.0
    %184 = vmatpush1.msra.mxu0 %v163
    %185 = vmatprep.subr.mxu0 0.0
    %186 = vmatpush1.msra.mxu0 %v164
    %187 = vmatprep.subr.mxu0 0.0
    %188 = vmatpush1.msra.mxu0 0.0
    %189 = vmatprep.subr.mxu0 0.0
    %190 = vmatpush1.msra.mxu0 0.0
    %191 = vmatprep.subr.mxu0 0.0
    %192 = vmatpush1.msra.mxu0 0.0
    %193 = vmatprep.subr.mxu0 0.0
    %194 = vmatpush1.msra.mxu0 0.0
    %195 = vmatprep.subr.mxu0 0.0
    %196 = vmatpush1.msra.mxu0 0.0
    %197 = vmatprep.subr.mxu0 0.0
    %198 = vmatpush1.msra.mxu0 0.0
    %199 = vmatprep.subr.mxu0 0.0
    %200 = vmatpush1.msra.mxu0 0.0
    %201 = vmatprep.subr.mxu0 0.0
    %202 = vmatpush1.msra.mxu0 0.0
    %203 = vmatprep.subr.mxu0 0.0
    %204 = vmatpush1.msra.mxu0 0.0
    %205 = vmatprep.subr.mxu0 0.0
    %206 = vmatpush1.msra.mxu0 0.0
    %207 = vmatprep.subr.mxu0 0.0
    %208 = vmatpush1.msra.mxu0 0.0
    %209 = vmatprep.subr.mxu0 0.0
    %210 = vmatpush1.msra.mxu0 0.0
    %211 = vmatprep.subr.mxu0 0.0
    %212 = vmatpush1.msra.mxu0 0.0
    %213 = vmatprep.subr.mxu0 0.0
    %214 = vmatpush1.msra.mxu0 0.0
    %215 = vmatprep.subr.mxu0 0.0
    %216 = vmatpush1.msra.mxu0 0.0
    %217 = vmatprep.subr.mxu0 0.0
    %218 = vmatpush1.msra.mxu0 0.0
    %219 = vmatprep.subr.mxu0 0.0
    %220 = vmatpush1.msra.mxu0 0.0
    %221 = vmatprep.subr.mxu0 0.0
    %222 = vmatpush1.msra.mxu0 0.0
    %223 = vmatprep.subr.mxu0 0.0
    %224 = vmatpush1.msra.mxu0 0.0
    %225 = vmatprep.subr.mxu0 0.0
    %226 = vmatpush1.msra.mxu0 0.0
    %227 = vmatprep.subr.mxu0 0.0
    %228 = vmatpush1.msra.mxu0 0.0
    %229 = vmatprep.subr.mxu0 0.0
    %230 = vmatpush1.msra.mxu0 0.0
    %231 = vmatprep.subr.mxu0 0.0
    %232 = vmatpush1.msra.mxu0 0.0
    %233 = vmatprep.subr.mxu0 0.0
    %234 = vmatpush1.msra.mxu0 0.0
    %235 = vmatprep.subr.mxu0 0.0
    %236 = vmatpush1.msra.mxu0 0.0
    %237 = vmatprep.subr.mxu0 0.0
    %238 = vmatpush1.msra.mxu0 0.0
    %239 = vmatprep.subr.mxu0 0.0
    %240 = vmatpush1.msra.mxu0 0.0
    %241 = vmatprep.subr.mxu0 0.0
    %242 = vmatpush1.msra.mxu0 0.0
    %243 = vmatprep.mubr.f32.mxu0 0.0
    %244 = vmatmul.mubr.f32.gmra.mrb[0].mxu0 %v177
    %v245 = vpop.f32.mrb[0].mxu0
    %v246 = vadd.f32 %v175, %v245
    %v247 = vpop.f32.mrb[0].mxu0
    %248 = vdwg.mxu0
    %v249 = vtanh.pop %v246
    %v250 = vsub.f32 1.0, %v160
    %v251 = vmul.f32 %v250, %v48
    %v252 = vmul.f32 %v160, %v249
    %v253 = vadd.f32 %v251, %v252
    %v254 = vld [vmem:[%s1 + $0x8] sm:$0xff]
    %255 = vrot.lane.b32.xlu0 %v48, 96
    %v256 = vpop.permute.xlu0 %255
    %259 = vrot.lane.b32.xlu0 %v254, 32
    %v260 = vpop.permute.xlu0 %259
    %v262 = vsel %vm54, %v256, %v260
    %s263 = scalar_lea.vmem [#allocation2], 160
    %v264 = vld [vmem:[%s263] sm:$0xff]
    %v265 = vld [vmem:[%s263 + $0x8] sm:$0xff]
    %v266 = vld [vmem:[%s263 + $0x10] sm:$0xff]
    %v267 = vld [vmem:[%s263 + $0x18] sm:$0xff]
    %v268 = vld [vmem:[%s263 + $0x20] sm:$0xff]
    %v269 = vld [vmem:[%s263 + $0x28] sm:$0xff]
    %v270 = vld [vmem:[%s263 + $0x30] sm:$0xff]
    %v271 = vld [vmem:[%s263 + $0x38] sm:$0xff]
    %v272 = vld [vmem:[%s263 + $0x40] sm:$0xff]
    %v273 = vld [vmem:[%s263 + $0x48] sm:$0xff]
    %v274 = vld [vmem:[%s263 + $0x50] sm:$0xff]
    %v275 = vld [vmem:[%s263 + $0x58] sm:$0xff]
    %v276 = vld [vmem:[%s263 + $0x60] sm:$0xff]
    %v277 = vld [vmem:[%s263 + $0x68] sm:$0xff]
    %v278 = vld [vmem:[%s263 + $0x70] sm:$0xff]
    %v279 = vld [vmem:[%s263 + $0x78] sm:$0xff]
    %v280 = vld [vmem:[%s263 + $0x80] sm:$0xff]
    %v281 = vld [vmem:[%s263 + $0x88] sm:$0xff]
    %v282 = vld [vmem:[%s263 + $0x90] sm:$0xff]
    %v283 = vld [vmem:[%s263 + $0x98] sm:$0xff]
    %s284 = scalar_lea.vmem %s4, 1
    %v285 = vld [vmem:[%s284] sm:$0x1]
    %v287 = vlaneseq
    %v288 = vshrl.u32 %v287, 7
    %v289 = vsub.s32 0, %v288
    %v290 = vrot.slane %v285, %v289
    %v292 = vsel %vm54, %v260, 0
    %294 = vmatprep.subr.mxu0 0.0
    %295 = vmatpush1.msra.mxu0 %v264
    %296 = vmatprep.subr.mxu0 0.0
    %297 = vmatpush1.msra.mxu0 %v265
    %298 = vmatprep.subr.mxu0 0.0
    %299 = vmatpush1.msra.mxu0 %v266
    %300 = vmatprep.subr.mxu0 0.0
    %301 = vmatpush1.msra.mxu0 %v267
    %302 = vmatprep.subr.mxu0 0.0
    %303 = vmatpush1.msra.mxu0 %v268
    %304 = vmatprep.subr.mxu0 0.0
    %305 = vmatpush1.msra.mxu0 %v269
    %306 = vmatprep.subr.mxu0 0.0
    %307 = vmatpush1.msra.mxu0 %v270
    %308 = vmatprep.subr.mxu0 0.0
    %309 = vmatpush1.msra.mxu0 %v271
    %310 = vmatprep.subr.mxu0 0.0
    %311 = vmatpush1.msra.mxu0 %v272
    %312 = vmatprep.subr.mxu0 0.0
    %313 = vmatpush1.msra.mxu0 %v273
    %314 = vmatprep.subr.mxu0 0.0
    %315 = vmatpush1.msra.mxu0 %v274
    %316 = vmatprep.subr.mxu0 0.0
    %317 = vmatpush1.msra.mxu0 %v275
    %318 = vmatprep.subr.mxu0 0.0
    %319 = vmatpush1.msra.mxu0 %v276
    %320 = vmatprep.subr.mxu0 0.0
    %321 = vmatpush1.msra.mxu0 %v277
    %322 = vmatprep.subr.mxu0 0.0
    %323 = vmatpush1.msra.mxu0 %v278
    %324 = vmatprep.subr.mxu0 0.0
    %325 = vmatpush1.msra.mxu0 %v279
    %326 = vmatprep.subr.mxu0 0.0
    %327 = vmatpush1.msra.mxu0 %v280
    %328 = vmatprep.subr.mxu0 0.0
    %329 = vmatpush1.msra.mxu0 %v281
    %330 = vmatprep.subr.mxu0 0.0
    %331 = vmatpush1.msra.mxu0 %v282
    %332 = vmatprep.subr.mxu0 0.0
    %333 = vmatpush1.msra.mxu0 %v283
    %334 = vmatprep.subr.mxu0 0.0
    %335 = vmatpush1.msra.mxu0 0.0
    %336 = vmatprep.subr.mxu0 0.0
    %337 = vmatpush1.msra.mxu0 0.0
    %338 = vmatprep.subr.mxu0 0.0
    %339 = vmatpush1.msra.mxu0 0.0
    %340 = vmatprep.subr.mxu0 0.0
    %341 = vmatpush1.msra.mxu0 0.0
    %342 = vmatprep.subr.mxu0 0.0
    %343 = vmatpush1.msra.mxu0 0.0
    %344 = vmatprep.subr.mxu0 0.0
    %345 = vmatpush1.msra.mxu0 0.0
    %346 = vmatprep.subr.mxu0 0.0
    %347 = vmatpush1.msra.mxu0 0.0
    %348 = vmatprep.subr.mxu0 0.0
    %349 = vmatpush1.msra.mxu0 0.0
    %350 = vmatprep.subr.mxu0 0.0
    %351 = vmatpush1.msra.mxu0 0.0
    %352 = vmatprep.subr.mxu0 0.0
    %353 = vmatpush1.msra.mxu0 0.0
    %354 = vmatprep.subr.mxu0 0.0
    %355 = vmatpush1.msra.mxu0 0.0
    %356 = vmatprep.subr.mxu0 0.0
    %357 = vmatpush1.msra.mxu0 0.0
    %358 = vmatprep.mubr.f32.mxu0 %v292
    %359 = vmatmul.mubr.f32.gmra.mrb[0].mxu0 %v262
    %v360 = vpop.f32.mrb[0].mxu0
    %v361 = vadd.f32 %v290, %v360
    %v362 = vpop.f32.mrb[0].mxu0
    %363 = vdwg.mxu0
    %v364 = vxor.u32 %v361, 2147483648
    %v365 = vmul.f32 %v364, 1.442695
    %v366 = vpow.pop %v365
    %v367 = vadd.f32 %v366, 1.0
    %v368 = vrcp.pop %v367
    %v369 = vmul.f32 1.0, %v368
    %s370 = scalar_lea.vmem [#allocation4], 32
    %v371 = vld [vmem:[%s370] sm:$0xff]
    %v372 = vld [vmem:[%s370 + $0x8] sm:$0xff]
    %v373 = vld [vmem:[%s370 + $0x10] sm:$0xff]
    %v374 = vld [vmem:[%s370 + $0x18] sm:$0xff]
    %v375 = vmul.f32 %v369, %v48
    %377 = vrot.lane.b32.xlu0 %v375, 96
    %v378 = vpop.permute.xlu0 %377
    %380 = vrot.lane.b32.xlu0 %v361, 64
    %v381 = vpop.permute.xlu0 %380
    %v383 = vsel %vm54, %v378, 0
    %385 = vmatprep.subr.mxu0 0.0
    %386 = vmatpush1.msra.mxu0 %v371
    %387 = vmatprep.subr.mxu0 0.0
    %388 = vmatpush1.msra.mxu0 %v372
    %389 = vmatprep.subr.mxu0 0.0
    %390 = vmatpush1.msra.mxu0 %v373
    %391 = vmatprep.subr.mxu0 0.0
    %392 = vmatpush1.msra.mxu0 %v374
    %393 = vmatprep.subr.mxu0 0.0
    %394 = vmatpush1.msra.mxu0 0.0
    %395 = vmatprep.subr.mxu0 0.0
    %396 = vmatpush1.msra.mxu0 0.0
    %397 = vmatprep.subr.mxu0 0.0
    %398 = vmatpush1.msra.mxu0 0.0
    %399 = vmatprep.subr.mxu0 0.0
    %400 = vmatpush1.msra.mxu0 0.0
    %401 = vmatprep.subr.mxu0 0.0
    %402 = vmatpush1.msra.mxu0 0.0
    %403 = vmatprep.subr.mxu0 0.0
    %404 = vmatpush1.msra.mxu0 0.0
    %405 = vmatprep.subr.mxu0 0.0
    %406 = vmatpush1.msra.mxu0 0.0
    %407 = vmatprep.subr.mxu0 0.0
    %408 = vmatpush1.msra.mxu0 0.0
    %409 = vmatprep.subr.mxu0 0.0
    %410 = vmatpush1.msra.mxu0 0.0
    %411 = vmatprep.subr.mxu0 0.0
    %412 = vmatpush1.msra.mxu0 0.0
    %413 = vmatprep.subr.mxu0 0.0
    %414 = vmatpush1.msra.mxu0 0.0
    %415 = vmatprep.subr.mxu0 0.0
    %416 = vmatpush1.msra.mxu0 0.0
    %417 = vmatprep.subr.mxu0 0.0
    %418 = vmatpush1.msra.mxu0 0.0
    %419 = vmatprep.subr.mxu0 0.0
    %420 = vmatpush1.msra.mxu0 0.0
    %421 = vmatprep.subr.mxu0 0.0
    %422 = vmatpush1.msra.mxu0 0.0
    %423 = vmatprep.subr.mxu0 0.0
    %424 = vmatpush1.msra.mxu0 0.0
    %425 = vmatprep.subr.mxu0 0.0
    %426 = vmatpush1.msra.mxu0 0.0
    %427 = vmatprep.subr.mxu0 0.0
    %428 = vmatpush1.msra.mxu0 0.0
    %429 = vmatprep.subr.mxu0 0.0
    %430 = vmatpush1.msra.mxu0 0.0
    %431 = vmatprep.subr.mxu0 0.0
    %432 = vmatpush1.msra.mxu0 0.0
    %433 = vmatprep.subr.mxu0 0.0
    %434 = vmatpush1.msra.mxu0 0.0
    %435 = vmatprep.subr.mxu0 0.0
    %436 = vmatpush1.msra.mxu0 0.0
    %437 = vmatprep.subr.mxu0 0.0
    %438 = vmatpush1.msra.mxu0 0.0
    %439 = vmatprep.subr.mxu0 0.0
    %440 = vmatpush1.msra.mxu0 0.0
    %441 = vmatprep.subr.mxu0 0.0
    %442 = vmatpush1.msra.mxu0 0.0
    %443 = vmatprep.subr.mxu0 0.0
    %444 = vmatpush1.msra.mxu0 0.0
    %445 = vmatprep.subr.mxu0 0.0
    %446 = vmatpush1.msra.mxu0 0.0
    %447 = vmatprep.subr.mxu0 0.0
    %448 = vmatpush1.msra.mxu0 0.0
    %449 = vmatprep.mubr.f32.mxu0 0.0
    %450 = vmatmul.mubr.f32.gmra.mrb[0].mxu0 %v383
    %v451 = vpop.f32.mrb[0].mxu0
    %v452 = vadd.f32 %v381, %v451
    %v453 = vpop.f32.mrb[0].mxu0
    %454 = vdwg.mxu0
    %v455 = vtanh.pop %v452
    %v456 = vsub.f32 1.0, %v369
    %v457 = vmul.f32 %v456, %v256
    %v458 = vmul.f32 %v369, %v455
    %v459 = vadd.f32 %v457, %v458
    %v460 = vld [vmem:[%s1 + $0x10] sm:$0xff]
    %461 = vrot.lane.b32.xlu0 %v48, 64
    %v462 = vpop.permute.xlu0 %461
    %465 = vrot.lane.b32.xlu0 %v460, 32
    %v466 = vpop.permute.xlu0 %465
    %v468 = vsel %vm54, %v462, %v466
    %s469 = scalar_lea.vmem [#allocation2], 320
    %v470 = vld [vmem:[%s469] sm:$0xff]
    %v471 = vld [vmem:[%s469 + $0x8] sm:$0xff]
    %v472 = vld [vmem:[%s469 + $0x10] sm:$0xff]
    %v473 = vld [vmem:[%s469 + $0x18] sm:$0xff]
    %v474 = vld [vmem:[%s469 + $0x20] sm:$0xff]
    %v475 = vld [vmem:[%s469 + $0x28] sm:$0xff]
    %v476 = vld [vmem:[%s469 + $0x30] sm:$0xff]
    %v477 = vld [vmem:[%s469 + $0x38] sm:$0xff]
    %v478 = vld [vmem:[%s469 + $0x40] sm:$0xff]
    %v479 = vld [vmem:[%s469 + $0x48] sm:$0xff]
    %v480 = vld [vmem:[%s469 + $0x50] sm:$0xff]
    %v481 = vld [vmem:[%s469 + $0x58] sm:$0xff]
    %v482 = vld [vmem:[%s469 + $0x60] sm:$0xff]
    %v483 = vld [vmem:[%s469 + $0x68] sm:$0xff]
    %v484 = vld [vmem:[%s469 + $0x70] sm:$0xff]
    %v485 = vld [vmem:[%s469 + $0x78] sm:$0xff]
    %v486 = vld [vmem:[%s469 + $0x80] sm:$0xff]
    %v487 = vld [vmem:[%s469 + $0x88] sm:$0xff]
    %v488 = vld [vmem:[%s469 + $0x90] sm:$0xff]
    %v489 = vld [vmem:[%s469 + $0x98] sm:$0xff]
    %s490 = scalar_lea.vmem %s4, 2
    %v491 = vld [vmem:[%s490] sm:$0x1]
    %v493 = vlaneseq
    %v494 = vshrl.u32 %v493, 7
    %v495 = vsub.s32 0, %v494
    %v496 = vrot.slane %v491, %v495
    %v498 = vsel %vm54, %v466, 0
    %500 = vmatprep.subr.mxu0 0.0
    %501 = vmatpush1.msra.mxu0 %v470
    %502 = vmatprep.subr.mxu0 0.0
    %503 = vmatpush1.msra.mxu0 %v471
    %504 = vmatprep.subr.mxu0 0.0
    %505 = vmatpush1.msra.mxu0 %v472
    %506 = vmatprep.subr.mxu0 0.0
    %507 = vmatpush1.msra.mxu0 %v473
    %508 = vmatprep.subr.mxu0 0.0
    %509 = vmatpush1.msra.mxu0 %v474
    %510 = vmatprep.subr.mxu0 0.0
    %511 = vmatpush1.msra.mxu0 %v475
    %512 = vmatprep.subr.mxu0 0.0
    %513 = vmatpush1.msra.mxu0 %v476
    %514 = vmatprep.subr.mxu0 0.0
    %515 = vmatpush1.msra.mxu0 %v477
    %516 = vmatprep.subr.mxu0 0.0
    %517 = vmatpush1.msra.mxu0 %v478
    %518 = vmatprep.subr.mxu0 0.0
    %519 = vmatpush1.msra.mxu0 %v479
    %520 = vmatprep.subr.mxu0 0.0
    %521 = vmatpush1.msra.mxu0 %v480
    %522 = vmatprep.subr.mxu0 0.0
    %523 = vmatpush1.msra.mxu0 %v481
    %524 = vmatprep.subr.mxu0 0.0
    %525 = vmatpush1.msra.mxu0 %v482
    %526 = vmatprep.subr.mxu0 0.0
    %527 = vmatpush1.msra.mxu0 %v483
    %528 = vmatprep.subr.mxu0 0.0
    %529 = vmatpush1.msra.mxu0 %v484
    %530 = vmatprep.subr.mxu0 0.0
    %531 = vmatpush1.msra.mxu0 %v485
    %532 = vmatprep.subr.mxu0 0.0
    %533 = vmatpush1.msra.mxu0 %v486
    %534 = vmatprep.subr.mxu0 0.0
    %535 = vmatpush1.msra.mxu0 %v487
    %536 = vmatprep.subr.mxu0 0.0
    %537 = vmatpush1.msra.mxu0 %v488
    %538 = vmatprep.subr.mxu0 0.0
    %539 = vmatpush1.msra.mxu0 %v489
    %540 = vmatprep.subr.mxu0 0.0
    %541 = vmatpush1.msra.mxu0 0.0
    %542 = vmatprep.subr.mxu0 0.0
    %543 = vmatpush1.msra.mxu0 0.0
    %544 = vmatprep.subr.mxu0 0.0
    %545 = vmatpush1.msra.mxu0 0.0
    %546 = vmatprep.subr.mxu0 0.0
    %547 = vmatpush1.msra.mxu0 0.0
    %548 = vmatprep.subr.mxu0 0.0
    %549 = vmatpush1.msra.mxu0 0.0
    %550 = vmatprep.subr.mxu0 0.0
    %551 = vmatpush1.msra.mxu0 0.0
    %552 = vmatprep.subr.mxu0 0.0
    %553 = vmatpush1.msra.mxu0 0.0
    %554 = vmatprep.subr.mxu0 0.0
    %555 = vmatpush1.msra.mxu0 0.0
    %556 = vmatprep.subr.mxu0 0.0
    %557 = vmatpush1.msra.mxu0 0.0
    %558 = vmatprep.subr.mxu0 0.0
    %559 = vmatpush1.msra.mxu0 0.0
    %560 = vmatprep.subr.mxu0 0.0
    %561 = vmatpush1.msra.mxu0 0.0
    %562 = vmatprep.subr.mxu0 0.0
    %563 = vmatpush1.msra.mxu0 0.0
    %564 = vmatprep.mubr.f32.mxu0 %v498
    %565 = vmatmul.mubr.f32.gmra.mrb[0].mxu0 %v468
    %v566 = vpop.f32.mrb[0].mxu0
    %v567 = vadd.f32 %v496, %v566
    %v568 = vpop.f32.mrb[0].mxu0
    %569 = vdwg.mxu0
    %v570 = vxor.u32 %v567, 2147483648
    %v571 = vmul.f32 %v570, 1.442695
    %v572 = vpow.pop %v571
    %v573 = vadd.f32 %v572, 1.0
    %v574 = vrcp.pop %v573
    %v575 = vmul.f32 1.0, %v574
    %s576 = scalar_lea.vmem [#allocation4], 64
    %v577 = vld [vmem:[%s576] sm:$0xff]
    %v578 = vld [vmem:[%s576 + $0x8] sm:$0xff]
    %v579 = vld [vmem:[%s576 + $0x10] sm:$0xff]
    %v580 = vld [vmem:[%s576 + $0x18] sm:$0xff]
    %v581 = vmul.f32 %v575, %v256
    %583 = vrot.lane.b32.xlu0 %v581, 96
    %v584 = vpop.permute.xlu0 %583
    %586 = vrot.lane.b32.xlu0 %v567, 64
    %v587 = vpop.permute.xlu0 %586
    %v589 = vsel %vm54, %v584, 0
    %591 = vmatprep.subr.mxu0 0.0
    %592 = vmatpush1.msra.mxu0 %v577
    %593 = vmatprep.subr.mxu0 0.0
    %594 = vmatpush1.msra.mxu0 %v578
    %595 = vmatprep.subr.mxu0 0.0
    %596 = vmatpush1.msra.mxu0 %v579
    %597 = vmatprep.subr.mxu0 0.0
    %598 = vmatpush1.msra.mxu0 %v580
    %599 = vmatprep.subr.mxu0 0.0
    %600 = vmatpush1.msra.mxu0 0.0
    %601 = vmatprep.subr.mxu0 0.0
    %602 = vmatpush1.msra.mxu0 0.0
    %603 = vmatprep.subr.mxu0 0.0
    %604 = vmatpush1.msra.mxu0 0.0
    %605 = vmatprep.subr.mxu0 0.0
    %606 = vmatpush1.msra.mxu0 0.0
    %607 = vmatprep.subr.mxu0 0.0
    %608 = vmatpush1.msra.mxu0 0.0
    %609 = vmatprep.subr.mxu0 0.0
    %610 = vmatpush1.msra.mxu0 0.0
    %611 = vmatprep.subr.mxu0 0.0
    %612 = vmatpush1.msra.mxu0 0.0
    %613 = vmatprep.subr.mxu0 0.0
    %614 = vmatpush1.msra.mxu0 0.0
    %615 = vmatprep.subr.mxu0 0.0
    %616 = vmatpush1.msra.mxu0 0.0
    %617 = vmatprep.subr.mxu0 0.0
    %618 = vmatpush1.msra.mxu0 0.0
    %619 = vmatprep.subr.mxu0 0.0
    %620 = vmatpush1.msra.mxu0 0.0
    %621 = vmatprep.subr.mxu0 0.0
    %622 = vmatpush1.msra.mxu0 0.0
    %623 = vmatprep.subr.mxu0 0.0
    %624 = vmatpush1.msra.mxu0 0.0
    %625 = vmatprep.subr.mxu0 0.0
    %626 = vmatpush1.msra.mxu0 0.0
    %627 = vmatprep.subr.mxu0 0.0
    %628 = vmatpush1.msra.mxu0 0.0
    %629 = vmatprep.subr.mxu0 0.0
    %630 = vmatpush1.msra.mxu0 0.0
    %631 = vmatprep.subr.mxu0 0.0
    %632 = vmatpush1.msra.mxu0 0.0
    %633 = vmatprep.subr.mxu0 0.0
    %634 = vmatpush1.msra.mxu0 0.0
    %635 = vmatprep.subr.mxu0 0.0
    %636 = vmatpush1.msra.mxu0 0.0
    %637 = vmatprep.subr.mxu0 0.0
    %638 = vmatpush1.msra.mxu0 0.0
    %639 = vmatprep.subr.mxu0 0.0
    %640 = vmatpush1.msra.mxu0 0.0
    %641 = vmatprep.subr.mxu0 0.0
    %642 = vmatpush1.msra.mxu0 0.0
    %643 = vmatprep.subr.mxu0 0.0
    %644 = vmatpush1.msra.mxu0 0.0
    %645 = vmatprep.subr.mxu0 0.0
    %646 = vmatpush1.msra.mxu0 0.0
    %647 = vmatprep.subr.mxu0 0.0
    %648 = vmatpush1.msra.mxu0 0.0
    %649 = vmatprep.subr.mxu0 0.0
    %650 = vmatpush1.msra.mxu0 0.0
    %651 = vmatprep.subr.mxu0 0.0
    %652 = vmatpush1.msra.mxu0 0.0
    %653 = vmatprep.subr.mxu0 0.0
    %654 = vmatpush1.msra.mxu0 0.0
    %655 = vmatprep.mubr.f32.mxu0 0.0
    %656 = vmatmul.mubr.f32.gmra.mrb[0].mxu0 %v589
    %v657 = vpop.f32.mrb[0].mxu0
    %v658 = vadd.f32 %v587, %v657
    %v659 = vpop.f32.mrb[0].mxu0
    %660 = vdwg.mxu0
    %v661 = vtanh.pop %v658
    %v662 = vsub.f32 1.0, %v575
    %v663 = vmul.f32 %v662, %v462
    %v664 = vmul.f32 %v575, %v661
    %v665 = vadd.f32 %v663, %v664
    %v666 = vld [vmem:[%s1 + $0x18] sm:$0xff]
    %668 = vrot.lane.b32.xlu0 %v666, 32
    %v669 = vpop.permute.xlu0 %668
    %v671 = vsel %vm54, %v167, %v669
    %s672 = scalar_lea.vmem [#allocation2], 480
    %v673 = vld [vmem:[%s672] sm:$0xff]
    %v674 = vld [vmem:[%s672 + $0x8] sm:$0xff]
    %v675 = vld [vmem:[%s672 + $0x10] sm:$0xff]
    %v676 = vld [vmem:[%s672 + $0x18] sm:$0xff]
    %v677 = vld [vmem:[%s672 + $0x20] sm:$0xff]
    %v678 = vld [vmem:[%s672 + $0x28] sm:$0xff]
    %v679 = vld [vmem:[%s672 + $0x30] sm:$0xff]
    %v680 = vld [vmem:[%s672 + $0x38] sm:$0xff]
    %v681 = vld [vmem:[%s672 + $0x40] sm:$0xff]
    %v682 = vld [vmem:[%s672 + $0x48] sm:$0xff]
    %v683 = vld [vmem:[%s672 + $0x50] sm:$0xff]
    %v684 = vld [vmem:[%s672 + $0x58] sm:$0xff]
    %v685 = vld [vmem:[%s672 + $0x60] sm:$0xff]
    %v686 = vld [vmem:[%s672 + $0x68] sm:$0xff]
    %v687 = vld [vmem:[%s672 + $0x70] sm:$0xff]
    %v688 = vld [vmem:[%s672 + $0x78] sm:$0xff]
    %v689 = vld [vmem:[%s672 + $0x80] sm:$0xff]
    %v690 = vld [vmem:[%s672 + $0x88] sm:$0xff]
    %v691 = vld [vmem:[%s672 + $0x90] sm:$0xff]
    %v692 = vld [vmem:[%s672 + $0x98] sm:$0xff]
    %s693 = scalar_lea.vmem %s4, 3
    %v694 = vld [vmem:[%s693] sm:$0x1]
    %v696 = vlaneseq
    %v697 = vshrl.u32 %v696, 7
    %v698 = vsub.s32 0, %v697
    %v699 = vrot.slane %v694, %v698
    %v701 = vsel %vm54, %v669, 0
    %703 = vmatprep.subr.mxu0 0.0
    %704 = vmatpush1.msra.mxu0 %v673
    %705 = vmatprep.subr.mxu0 0.0
    %706 = vmatpush1.msra.mxu0 %v674
    %707 = vmatprep.subr.mxu0 0.0
    %708 = vmatpush1.msra.mxu0 %v675
    %709 = vmatprep.subr.mxu0 0.0
    %710 = vmatpush1.msra.mxu0 %v676
    %711 = vmatprep.subr.mxu0 0.0
    %712 = vmatpush1.msra.mxu0 %v677
    %713 = vmatprep.subr.mxu0 0.0
    %714 = vmatpush1.msra.mxu0 %v678
    %715 = vmatprep.subr.mxu0 0.0
    %716 = vmatpush1.msra.mxu0 %v679
    %717 = vmatprep.subr.mxu0 0.0
    %718 = vmatpush1.msra.mxu0 %v680
    %719 = vmatprep.subr.mxu0 0.0
    %720 = vmatpush1.msra.mxu0 %v681
    %721 = vmatprep.subr.mxu0 0.0
    %722 = vmatpush1.msra.mxu0 %v682
    %723 = vmatprep.subr.mxu0 0.0
    %724 = vmatpush1.msra.mxu0 %v683
    %725 = vmatprep.subr.mxu0 0.0
    %726 = vmatpush1.msra.mxu0 %v684
    %727 = vmatprep.subr.mxu0 0.0
    %728 = vmatpush1.msra.mxu0 %v685
    %729 = vmatprep.subr.mxu0 0.0
    %730 = vmatpush1.msra.mxu0 %v686
    %731 = vmatprep.subr.mxu0 0.0
    %732 = vmatpush1.msra.mxu0 %v687
    %733 = vmatprep.subr.mxu0 0.0
    %734 = vmatpush1.msra.mxu0 %v688
    %735 = vmatprep.subr.mxu0 0.0
    %736 = vmatpush1.msra.mxu0 %v689
    %737 = vmatprep.subr.mxu0 0.0
    %738 = vmatpush1.msra.mxu0 %v690
    %739 = vmatprep.subr.mxu0 0.0
    %740 = vmatpush1.msra.mxu0 %v691
    %741 = vmatprep.subr.mxu0 0.0
    %742 = vmatpush1.msra.mxu0 %v692
    %743 = vmatprep.subr.mxu0 0.0
    %744 = vmatpush1.msra.mxu0 0.0
    %745 = vmatprep.subr.mxu0 0.0
    %746 = vmatpush1.msra.mxu0 0.0
    %747 = vmatprep.subr.mxu0 0.0
    %748 = vmatpush1.msra.mxu0 0.0
    %749 = vmatprep.subr.mxu0 0.0
    %750 = vmatpush1.msra.mxu0 0.0
    %751 = vmatprep.subr.mxu0 0.0
    %752 = vmatpush1.msra.mxu0 0.0
    %753 = vmatprep.subr.mxu0 0.0
    %754 = vmatpush1.msra.mxu0 0.0
    %755 = vmatprep.subr.mxu0 0.0
    %756 = vmatpush1.msra.mxu0 0.0
    %757 = vmatprep.subr.mxu0 0.0
    %758 = vmatpush1.msra.mxu0 0.0
    %759 = vmatprep.subr.mxu0 0.0
    %760 = vmatpush1.msra.mxu0 0.0
    %761 = vmatprep.subr.mxu0 0.0
    %762 = vmatpush1.msra.mxu0 0.0
    %763 = vmatprep.subr.mxu0 0.0
    %764 = vmatpush1.msra.mxu0 0.0
    %765 = vmatprep.subr.mxu0 0.0
    %766 = vmatpush1.msra.mxu0 0.0
    %767 = vmatprep.mubr.f32.mxu0 %v701
    %768 = vmatmul.mubr.f32.gmra.mrb[0].mxu0 %v671
    %v769 = vpop.f32.mrb[0].mxu0
    %v770 = vadd.f32 %v699, %v769
    %v771 = vpop.f32.mrb[0].mxu0
    %772 = vdwg.mxu0
    %v773 = vxor.u32 %v770, 2147483648
    %v774 = vmul.f32 %v773, 1.442695
    %v775 = vpow.pop %v774
    %v776 = vadd.f32 %v775, 1.0
    %v777 = vrcp.pop %v776
    %v778 = vmul.f32 1.0, %v777
    %s779 = scalar_lea.vmem [#allocation4], 96
    %v780 = vld [vmem:[%s779] sm:$0xff]
    %v781 = vld [vmem:[%s779 + $0x8] sm:$0xff]
    %v782 = vld [vmem:[%s779 + $0x10] sm:$0xff]
    %v783 = vld [vmem:[%s779 + $0x18] sm:$0xff]
    %v784 = vmul.f32 %v778, %v462
    %786 = vrot.lane.b32.xlu0 %v784, 96
    %v787 = vpop.permute.xlu0 %786
    %789 = vrot.lane.b32.xlu0 %v770, 64
    %v790 = vpop.permute.xlu0 %789
    %v792 = vsel %vm54, %v787, 0
    %794 = vmatprep.subr.mxu0 0.0
    %795 = vmatpush1.msra.mxu0 %v780
    %796 = vmatprep.subr.mxu0 0.0
    %797 = vmatpush1.msra.mxu0 %v781
    %798 = vmatprep.subr.mxu0 0.0
    %799 = vmatpush1.msra.mxu0 %v782
    %800 = vmatprep.subr.mxu0 0.0
    %801 = vmatpush1.msra.mxu0 %v783
    %802 = vmatprep.subr.mxu0 0.0
    %803 = vmatpush1.msra.mxu0 0.0
    %804 = vmatprep.subr.mxu0 0.0
    %805 = vmatpush1.msra.mxu0 0.0
    %806 = vmatprep.subr.mxu0 0.0
    %807 = vmatpush1.msra.mxu0 0.0
    %808 = vmatprep.subr.mxu0 0.0
    %809 = vmatpush1.msra.mxu0 0.0
    %810 = vmatprep.subr.mxu0 0.0
    %811 = vmatpush1.msra.mxu0 0.0
    %812 = vmatprep.subr.mxu0 0.0
    %813 = vmatpush1.msra.mxu0 0.0
    %814 = vmatprep.subr.mxu0 0.0
    %815 = vmatpush1.msra.mxu0 0.0
    %816 = vmatprep.subr.mxu0 0.0
    %817 = vmatpush1.msra.mxu0 0.0
    %818 = vmatprep.subr.mxu0 0.0
    %819 = vmatpush1.msra.mxu0 0.0
    %820 = vmatprep.subr.mxu0 0.0
    %821 = vmatpush1.msra.mxu0 0.0
    %822 = vmatprep.subr.mxu0 0.0
    %823 = vmatpush1.msra.mxu0 0.0
    %824 = vmatprep.subr.mxu0 0.0
    %825 = vmatpush1.msra.mxu0 0.0
    %826 = vmatprep.subr.mxu0 0.0
    %827 = vmatpush1.msra.mxu0 0.0
    %828 = vmatprep.subr.mxu0 0.0
    %829 = vmatpush1.msra.mxu0 0.0
    %830 = vmatprep.subr.mxu0 0.0
    %831 = vmatpush1.msra.mxu0 0.0
    %832 = vmatprep.subr.mxu0 0.0
    %833 = vmatpush1.msra.mxu0 0.0
    %834 = vmatprep.subr.mxu0 0.0
    %835 = vmatpush1.msra.mxu0 0.0
    %836 = vmatprep.subr.mxu0 0.0
    %837 = vmatpush1.msra.mxu0 0.0
    %838 = vmatprep.subr.mxu0 0.0
    %839 = vmatpush1.msra.mxu0 0.0
    %840 = vmatprep.subr.mxu0 0.0
    %841 = vmatpush1.msra.mxu0 0.0
    %842 = vmatprep.subr.mxu0 0.0
    %843 = vmatpush1.msra.mxu0 0.0
    %844 = vmatprep.subr.mxu0 0.0
    %845 = vmatpush1.msra.mxu0 0.0
    %846 = vmatprep.subr.mxu0 0.0
    %847 = vmatpush1.msra.mxu0 0.0
    %848 = vmatprep.subr.mxu0 0.0
    %849 = vmatpush1.msra.mxu0 0.0
    %850 = vmatprep.subr.mxu0 0.0
    %851 = vmatpush1.msra.mxu0 0.0
    %852 = vmatprep.subr.mxu0 0.0
    %853 = vmatpush1.msra.mxu0 0.0
    %854 = vmatprep.subr.mxu0 0.0
    %855 = vmatpush1.msra.mxu0 0.0
    %856 = vmatprep.subr.mxu0 0.0
    %857 = vmatpush1.msra.mxu0 0.0
    %858 = vmatprep.mubr.f32.mxu0 0.0
    %859 = vmatmul.mubr.f32.gmra.mrb[0].mxu0 %v792
    %v860 = vpop.f32.mrb[0].mxu0
    %v861 = vadd.f32 %v790, %v860
    %v862 = vpop.f32.mrb[0].mxu0
    %863 = vdwg.mxu0
    %v864 = vtanh.pop %v861
    %v865 = vsub.f32 1.0, %v778
    %v866 = vmul.f32 %v865, %v167
    %v867 = vmul.f32 %v778, %v864
    %v868 = vadd.f32 %v866, %v867
    %870 = vrot.lane.b32.xlu0 %v459, 32
    %v871 = vpop.permute.xlu0 %870
    %874 = vrot.lane.b32.xlu0 %v665, 64
    %v875 = vpop.permute.xlu0 %874
    %878 = vrot.lane.b32.xlu0 %v868, 96
    %v879 = vpop.permute.xlu0 %878
    %v881 = vsel %vm54, %v253, %v871
    %vm882 = vcmask 523264
    %v883 = vsel %vm882, %v881, %v875
    %vm884 = vcmask 785408
    %v885 = vsel %vm884, %v883, %v879
    %886 = vst [vmem:[%s5] sm:$0xff] %v885
    // Predicated region
    $region30: #{multi_gru.1} parent=1 // pred_check
      _
    $region31: #{multi_gru.1} parent=1 // pred_check_branch
      %888 = sbr.rel (0) target = $region33
    $region32: #{multi_gru.1} parent=1 // pred_region
      _
    $region33: #{multi_gru.1} parent=1 // pred_fallthru
      _
    // Predicated region
    $region34: #{multi_gru.1} parent=1 // pred_check
      _
    $region35: #{multi_gru.1} parent=1 // pred_check_branch
      %890 = sbr.rel (0) target = $region37
    $region36: #{multi_gru.1} parent=1 // pred_region
      _
    $region37: #{multi_gru.1} parent=1 // pred_fallthru
      _
    %891 = vsyncpa [#allocation3], 1
    %892 = vsyncpa [#allocation5], 1

</llo_original>
